<compile_context>
chip_gen: v7x
topology: tpu7x:2x2x1
jax: 0.10.0
libtpu: 0.0.40
codegen_flags: <defaults>
</compile_context>

<pallas_src>
import math

import jax
import jax.numpy as jnp
from jax.experimental import pallas as pl
from jax.experimental.pallas import tpu as pltpu


def _operand_attention_kernel(
    out_ref,      # (Bt, S_out, D)             bf16
    opnd_ref,     # (Bt, S_opnd, D)            bf16
    gamma_ref,    # (1, D)                     f32
    beta_ref,     # (1, D)                     f32
    w_opt_ref,    # (D, 2D)  bf16   (1/sqrt(D) pre-folded)
    b_opt_ref,    # (1, 2D)  f32    (1/sqrt(D) pre-folded)
    w_opnd_ref,   # (D, 2D)  bf16
    b_opnd_ref,   # (1, 2D)  f32
    scores_ref,   # (Bt, 1, 2*S_out*S_opnd)    f32 ; [left | right] packed
):
    bt, s_out, d = out_ref.shape
    s_opnd = opnd_ref.shape[1]

    # ---- LayerNorm over features (one-pass variance, clamped), eps=1e-12 ----
    x = opnd_ref[...].astype(jnp.float32).reshape(bt * s_opnd, d)
    mean = jnp.mean(x, axis=-1, keepdims=True)
    mean_sq = jnp.mean(x * x, axis=-1, keepdims=True)
    var = jnp.maximum(mean_sq - mean * mean, 0.0)
    xn = (x - mean) * jax.lax.rsqrt(var + 1e-12)
    xn = xn * gamma_ref[...] + beta_ref[...]                    # (Bt*S_opnd, D)

    out_rows = out_ref[...].reshape(bt * s_out, d)              # bf16 already

    # ---- fused projections: one (rows, D) x (D, 2D) matmul per side ----
    q = jnp.dot(out_rows, w_opt_ref[...],
                preferred_element_type=jnp.float32) + b_opt_ref[...]
    k = jnp.dot(xn.astype(jnp.bfloat16), w_opnd_ref[...],
                preferred_element_type=jnp.float32) + b_opnd_ref[...]

    q = q.astype(jnp.bfloat16).reshape(bt, s_out, 2 * d)
    k = k.astype(jnp.bfloat16).reshape(bt, s_opnd, 2 * d)

    # ---- batched score matmuls (contract feature dim, no key transpose) ----
    dn = (((2,), (2,)), ((0,), (0,)))     # contract dim 2, batch dim 0
    left = jax.lax.dot_general(q[..., :d], k[..., :d], dn,
                               preferred_element_type=jnp.float32)
    right = jax.lax.dot_general(q[..., d:], k[..., d:], dn,
                                preferred_element_type=jnp.float32)

    # ---- single lane-dense store: [left_flat | right_flat] per batch row ----
    packed = jnp.concatenate(
        [left.reshape(bt, s_out * s_opnd), right.reshape(bt, s_out * s_opnd)],
        axis=-1)
    scores_ref[...] = packed.reshape(bt, 1, 2 * s_out * s_opnd).astype(
        scores_ref.dtype)


def _chip_flavor():
    try:
        kind = jax.devices()[0].device_kind.lower()
    except Exception:
        kind = ""
    is_v7 = ("v7" in kind) or ("7x" in kind)
    is_v5 = "v5" in kind
    return is_v5, is_v7


def _vmem_capacity_bytes(is_v7):
    try:
        return int(pltpu.get_tpu_info().vmem_capacity_bytes)
    except Exception:
        return (64 if is_v7 else 128) * 1024 * 1024


def _pick_block_batch(batch, s_out, target_rows, max_block=None):
    """Largest divisor of `batch` keeping ~target_rows projection rows/step."""
    cap = max(1, target_rows // max(s_out, 1))
    if max_block is not None:
        cap = min(cap, max(1, max_block))
    best = 1
    for cand in range(1, batch + 1):
        if batch % cand == 0 and cand <= cap:
            best = cand
    return best


def operand_attention(output, opnd_embeddings, params, *, block_batch=None):
    """output: [B, S_out, D], opnd_embeddings: [B, S_opnd, D] -> (left, right)."""
    B, S_out, D = output.shape
    _, S_opnd, _ = opnd_embeddings.shape
    # Lane slices q[..., :d] / q[..., d:] are only free when D is tile-aligned.
    assert D % 128 == 0, "operand_attention kernel expects d_model % 128 == 0"

    is_v5, is_v7 = _chip_flavor()

    if block_batch is None:
        # v5e: 4x128 MXU -> ~128 rows/step; v6e/v7x: 2x256 MXU -> fill more rows.
        target_rows = 128 if is_v5 else 512
        # v7x has 2 TensorCores: keep >= 2 parallel grid steps when possible.
        max_block = (B // 2) if (is_v7 and B >= 2) else None
        block_batch = _pick_block_batch(B, S_out, target_rows, max_block)
    assert B % block_batch == 0
    grid = (B // block_batch,)

    # Grid-invariant parameters: single-buffered (constant index_map).
    w_spec = pl.BlockSpec((D, 2 * D), lambda b: (0, 0),
                          pipeline_mode=pl.Buffered(1))
    b2_spec = pl.BlockSpec((1, 2 * D), lambda b: (0, 0),
                           pipeline_mode=pl.Buffered(1))
    v_spec = pl.BlockSpec((1, D), lambda b: (0, 0),
                          pipeline_mode=pl.Buffered(1))

    lane_out = 2 * S_out * S_opnd   # packed [left | right] row per batch entry

    grid_spec = pltpu.PrefetchScalarGridSpec(
        num_scalar_prefetch=0,
        grid=grid,
        in_specs=[
            pl.BlockSpec((block_batch, S_out, D), lambda b: (b, 0, 0)),
            pl.BlockSpec((block_batch, S_opnd, D), lambda b: (b, 0, 0)),
            v_spec,            # gamma
            v_spec,            # beta
            w_spec, b2_spec,   # fused opt_linear{1,2}  (pre-scaled)
            w_spec, b2_spec,   # fused opnd_linear{1,2}
        ],
        out_specs=pl.BlockSpec((block_batch, 1, lane_out), lambda b: (b, 0, 0)),
    )

    # VMEM budget: bf16 single-buffered weights, double-buffered bf16
    # activations, double-buffered f32 packed-score output, f32 intermediates.
    vmem_est = (
        2 * (D * 2 * D * 2) + 2 * (2 * D * 4) + 2 * (D * 4)          # params
        + 2 * block_batch * (S_out + S_opnd) * D * 2                  # inputs x2
        + 2 * block_batch * lane_out * 4                              # output x2
        + block_batch * (S_out + S_opnd) * 2 * D * 8                  # q/k f32+bf16
        + block_batch * S_opnd * D * 8                                # LN temps
    )
    default_scoped = (16 if is_v5 else 32) * 1024 * 1024
    vmem_limit = None
    if vmem_est > default_scoped:
        capacity = _vmem_capacity_bytes(is_v7)
        vmem_limit = min(int(1.25 * vmem_est), int(0.85 * capacity))

    scores = pl.pallas_call(
        _operand_attention_kernel,
        grid_spec=grid_spec,
        out_shape=jax.ShapeDtypeStruct((B, 1, lane_out), jnp.float32),
        compiler_params=pltpu.CompilerParams(
            dimension_semantics=("parallel",),
            vmem_limit_bytes=vmem_limit,
        ),
    )(
        output.astype(jnp.bfloat16),            # halve activation DMA bytes
        opnd_embeddings.astype(jnp.bfloat16),
        params["gamma"], params["beta"],
        params["w_opt"], params["b_opt"],
        params["w_opnd"], params["b_opnd"],
    )
    scores = scores.reshape(B, 2, S_out, S_opnd)
    return scores[:, 0], scores[:, 1]


# --------------------------- parameters & reference ---------------------------

def init_raw_params(key, d_model):
    """Unfused params matching the nn.Module (PyTorch Linear layout [out,in])."""
    ks = jax.random.split(key, 8)
    scale = 1.0 / math.sqrt(d_model)

    def lin(kw, kb):
        w = jax.random.uniform(kw, (d_model, d_model), jnp.float32,
                               minval=-scale, maxval=scale)
        b = jax.random.uniform(kb, (d_model,), jnp.float32,
                               minval=-scale, maxval=scale)
        return w, b

    w1, b1 = lin(ks[0], ks[1])   # opt_linear1
    w2, b2 = lin(ks[2], ks[3])   # opt_linear2
    w3, b3 = lin(ks[4], ks[5])   # opnd_linear1
    w4, b4 = lin(ks[6], ks[7])   # opnd_linear2
    return {
        "gamma": jnp.ones((d_model,), jnp.float32),   # nn.LayerNorm init
        "beta": jnp.zeros((d_model,), jnp.float32),
        "w_opt1": w1, "b_opt1": b1, "w_opt2": w2, "b_opt2": b2,
        "w_opnd1": w3, "b_opnd1": b3, "w_opnd2": w4, "b_opnd2": b4,
    }


def fuse_params(raw, d_model):
    """Fuse the 4 Linears into 2 [D,2D] weights; fold 1/sqrt(D) into the query."""
    inv_sqrt_d = 1.0 / math.sqrt(d_model)
    w_opt = jnp.concatenate([raw["w_opt1"].T, raw["w_opt2"].T], axis=1) * inv_sqrt_d
    b_opt = (jnp.concatenate([raw["b_opt1"], raw["b_opt2"]]) * inv_sqrt_d)[None, :]
    w_opnd = jnp.concatenate([raw["w_opnd1"].T, raw["w_opnd2"].T], axis=1)
    b_opnd = jnp.concatenate([raw["b_opnd1"], raw["b_opnd2"]])[None, :]
    return {
        "gamma": raw["gamma"][None, :],
        "beta": raw["beta"][None, :],
        "w_opt": w_opt.astype(jnp.bfloat16),    # bf16 MXU operands
        "b_opt": b_opt.astype(jnp.float32),     # f32 (added post f32-accum)
        "w_opnd": w_opnd.astype(jnp.bfloat16),
        "b_opnd": b_opnd.astype(jnp.float32),
    }


def _reference(output, opnd, raw, d_model):
    """Pure-JAX f32 reference following the PyTorch module (unfused params)."""
    x = opnd
    mean = jnp.mean(x, axis=-1, keepdims=True)
    var = jnp.mean((x - mean) ** 2, axis=-1, keepdims=True)
    xn = (x - mean) / jnp.sqrt(var + 1e-12) * raw["gamma"] + raw["beta"]

    lq = (output @ raw["w_opt1"].T + raw["b_opt1"]) / math.sqrt(d_model)
    lk = xn @ raw["w_opnd1"].T + raw["b_opnd1"]
    left = jnp.einsum("bqd,bkd->bqk", lq, lk)

    rq = (output @ raw["w_opt2"].T + raw["b_opt2"]) / math.sqrt(d_model)
    rk = xn @ raw["w_opnd2"].T + raw["b_opnd2"]
    right = jnp.einsum("bqd,bkd->bqk", rq, rk)
    return left, right


if __name__ == "__main__":
    B, S_OUT, S_OPND, D = 2, 8, 16, 128

    key = jax.random.PRNGKey(0)
    k_out, k_opnd, k_params = jax.random.split(key, 3)
    output = jax.random.normal(k_out, (B, S_OUT, D), jnp.float32)
    opnd_embeddings = jax.random.normal(k_opnd, (B, S_OPND, D), jnp.float32)

    raw_params = init_raw_params(k_params, D)
    params = fuse_params(raw_params, D)

    left, right = operand_attention(output, opnd_embeddings, params)
    jax.block_until_ready((left, right))

    ref_left, ref_right = _reference(output, opnd_embeddings, raw_params, D)
    # bf16 MXU operands / bf16 activations (f32 accumulation) vs f32 reference.
    assert jnp.allclose(left, ref_left, atol=5e-2, rtol=5e-2), \
        float(jnp.max(jnp.abs(left - ref_left)))
    assert jnp.allclose(right, ref_right, atol=5e-2, rtol=5e-2), \
        float(jnp.max(jnp.abs(right - ref_right)))

    print("KERNEL_OK")
</pallas_src>

<mosaic_0001>
module attributes {stable_mosaic.version = 11 : i64} {
  func.func @_operand_attention_kernel(%arg0: i32, %arg1: memref<2x8x128xbf16, #tpu.memory_space<vmem>>, %arg2: memref<2x16x128xbf16, #tpu.memory_space<vmem>>, %arg3: memref<1x128xf32, #tpu.memory_space<vmem>>, %arg4: memref<1x128xf32, #tpu.memory_space<vmem>>, %arg5: memref<128x256xbf16, #tpu.memory_space<vmem>>, %arg6: memref<1x256xf32, #tpu.memory_space<vmem>>, %arg7: memref<128x256xbf16, #tpu.memory_space<vmem>>, %arg8: memref<1x256xf32, #tpu.memory_space<vmem>>, %arg9: memref<2x1x256xf32, #tpu.memory_space<vmem>>) attributes {dimension_semantics = [#tpu.dimension_semantics<parallel>], iteration_bounds = array<i64: 1>, scalar_prefetch = 0 : i64, scratch_operands = 0 : i64, tpu.core_type = #tpu.core_type<tc>, window_params = [{transform_indices = @transform_0, window_bounds = array<i64: 2, 8, 128>}, {transform_indices = @transform_1, window_bounds = array<i64: 2, 16, 128>}, {pipeline_mode = #tpu.pipeline_mode<synchronous>, transform_indices = @transform_2, window_bounds = array<i64: 1, 128>}, {pipeline_mode = #tpu.pipeline_mode<synchronous>, transform_indices = @transform_3, window_bounds = array<i64: 1, 128>}, {pipeline_mode = #tpu.pipeline_mode<synchronous>, transform_indices = @transform_4, window_bounds = array<i64: 128, 256>}, {pipeline_mode = #tpu.pipeline_mode<synchronous>, transform_indices = @transform_5, window_bounds = array<i64: 1, 256>}, {pipeline_mode = #tpu.pipeline_mode<synchronous>, transform_indices = @transform_6, window_bounds = array<i64: 128, 256>}, {pipeline_mode = #tpu.pipeline_mode<synchronous>, transform_indices = @transform_7, window_bounds = array<i64: 1, 256>}, {transform_indices = @transform_8, window_bounds = array<i64: 2, 1, 256>}]} {
    %c0 = arith.constant 0 : index
    %c0_0 = arith.constant 0 : index
    %c0_1 = arith.constant 0 : index
    %0 = vector.load %arg2[%c0, %c0_0, %c0_1] : memref<2x16x128xbf16, #tpu.memory_space<vmem>>, vector<2x16x128xbf16>
    %1 = arith.extf %0 : vector<2x16x128xbf16> to vector<2x16x128xf32>
    %2 = vector.shape_cast %1 : vector<2x16x128xf32> to vector<32x128xf32>
    %cst = arith.constant dense<0.000000e+00> : vector<32xf32>
    %3 = vector.multi_reduction <add>, %2, %cst [1] : vector<32x128xf32> to vector<32xf32>
    %4 = vector.shape_cast %3 : vector<32xf32> to vector<32x1xf32>
    %cst_2 = arith.constant 1.280000e+02 : f32
    %5 = vector.broadcast %cst_2 : f32 to vector<32x1xf32>
    %6 = arith.divf %4, %5 : vector<32x1xf32>
    %7 = arith.mulf %2, %2 : vector<32x128xf32>
    %cst_3 = arith.constant dense<0.000000e+00> : vector<32xf32>
    %8 = vector.multi_reduction <add>, %7, %cst_3 [1] : vector<32x128xf32> to vector<32xf32>
    %9 = vector.shape_cast %8 : vector<32xf32> to vector<32x1xf32>
    %cst_4 = arith.constant 1.280000e+02 : f32
    %10 = vector.broadcast %cst_4 : f32 to vector<32x1xf32>
    %11 = arith.divf %9, %10 : vector<32x1xf32>
    %12 = arith.mulf %6, %6 : vector<32x1xf32>
    %13 = arith.subf %11, %12 : vector<32x1xf32>
    %cst_5 = arith.constant 0.000000e+00 : f32
    %14 = vector.broadcast %cst_5 : f32 to vector<32x1xf32>
    %15 = arith.maximumf %13, %14 : vector<32x1xf32>
    %16 = vector.broadcast %6 : vector<32x1xf32> to vector<32x128xf32>
    %17 = arith.subf %2, %16 : vector<32x128xf32>
    %cst_6 = arith.constant 9.99999996E-13 : f32
    %18 = vector.broadcast %cst_6 : f32 to vector<32x1xf32>
    %19 = arith.addf %15, %18 : vector<32x1xf32>
    %20 = math.rsqrt %19 : vector<32x1xf32>
    %21 = vector.broadcast %20 : vector<32x1xf32> to vector<32x128xf32>
    %22 = arith.mulf %17, %21 : vector<32x128xf32>
    %c0_7 = arith.constant 0 : index
    %c0_8 = arith.constant 0 : index
    %23 = vector.load %arg3[%c0_7, %c0_8] : memref<1x128xf32, #tpu.memory_space<vmem>>, vector<1x128xf32>
    %24 = vector.broadcast %23 : vector<1x128xf32> to vector<32x128xf32>
    %25 = arith.mulf %22, %24 : vector<32x128xf32>
    %c0_9 = arith.constant 0 : index
    %c0_10 = arith.constant 0 : index
    %26 = vector.load %arg4[%c0_9, %c0_10] : memref<1x128xf32, #tpu.memory_space<vmem>>, vector<1x128xf32>
    %27 = vector.broadcast %26 : vector<1x128xf32> to vector<32x128xf32>
    %28 = arith.addf %25, %27 : vector<32x128xf32>
    %c0_11 = arith.constant 0 : index
    %c0_12 = arith.constant 0 : index
    %c0_13 = arith.constant 0 : index
    %29 = vector.load %arg1[%c0_11, %c0_12, %c0_13] : memref<2x8x128xbf16, #tpu.memory_space<vmem>>, vector<2x8x128xbf16>
    %30 = vector.shape_cast %29 : vector<2x8x128xbf16> to vector<16x128xbf16>
    %c0_14 = arith.constant 0 : index
    %c0_15 = arith.constant 0 : index
    %31 = vector.load %arg5[%c0_14, %c0_15] : memref<128x256xbf16, #tpu.memory_space<vmem>>, vector<128x256xbf16>
    %cst_16 = arith.constant dense<0.000000e+00> : vector<16x256xf32>
    %32 = tpu.matmul %30, %31, %cst_16 {dimension_numbers = #tpu.dot_dimension_numbers<[1], [0], [0], [1], [0, 0, 1, 1], [], []>} : vector<16x128xbf16>, vector<128x256xbf16>, vector<16x256xf32> -> vector<16x256xf32>
    %c0_17 = arith.constant 0 : index
    %c0_18 = arith.constant 0 : index
    %33 = vector.load %arg6[%c0_17, %c0_18] : memref<1x256xf32, #tpu.memory_space<vmem>>, vector<1x256xf32>
    %34 = vector.broadcast %33 : vector<1x256xf32> to vector<16x256xf32>
    %35 = arith.addf %32, %34 : vector<16x256xf32>
    %36 = arith.truncf %28 : vector<32x128xf32> to vector<32x128xbf16>
    %c0_19 = arith.constant 0 : index
    %c0_20 = arith.constant 0 : index
    %37 = vector.load %arg7[%c0_19, %c0_20] : memref<128x256xbf16, #tpu.memory_space<vmem>>, vector<128x256xbf16>
    %cst_21 = arith.constant dense<0.000000e+00> : vector<32x256xf32>
    %38 = tpu.matmul %36, %37, %cst_21 {dimension_numbers = #tpu.dot_dimension_numbers<[1], [0], [0], [1], [0, 0, 1, 1], [], []>} : vector<32x128xbf16>, vector<128x256xbf16>, vector<32x256xf32> -> vector<32x256xf32>
    %c0_22 = arith.constant 0 : index
    %c0_23 = arith.constant 0 : index
    %39 = vector.load %arg8[%c0_22, %c0_23] : memref<1x256xf32, #tpu.memory_space<vmem>>, vector<1x256xf32>
    %40 = vector.broadcast %39 : vector<1x256xf32> to vector<32x256xf32>
    %41 = arith.addf %38, %40 : vector<32x256xf32>
    %42 = arith.truncf %35 : vector<16x256xf32> to vector<16x256xbf16>
    %43 = vector.shape_cast %42 : vector<16x256xbf16> to vector<2x8x256xbf16>
    %44 = arith.truncf %41 : vector<32x256xf32> to vector<32x256xbf16>
    %45 = vector.shape_cast %44 : vector<32x256xbf16> to vector<2x16x256xbf16>
    %46 = vector.extract_strided_slice %43 {offsets = [0, 0, 0], sizes = [2, 8, 128], strides = [1, 1, 1]} : vector<2x8x256xbf16> to vector<2x8x128xbf16>
    %47 = vector.extract_strided_slice %45 {offsets = [0, 0, 0], sizes = [2, 16, 128], strides = [1, 1, 1]} : vector<2x16x256xbf16> to vector<2x16x128xbf16>
    %cst_24 = arith.constant dense<0.000000e+00> : vector<2x8x16xf32>
    %48 = tpu.matmul %46, %47, %cst_24 {dimension_numbers = #tpu.dot_dimension_numbers<[2], [2], [1], [1], [0, 0, 0, 1, 1, 1], [0], [0]>} : vector<2x8x128xbf16>, vector<2x16x128xbf16>, vector<2x8x16xf32> -> vector<2x8x16xf32>
    %49 = vector.extract_strided_slice %43 {offsets = [0, 0, 128], sizes = [2, 8, 128], strides = [1, 1, 1]} : vector<2x8x256xbf16> to vector<2x8x128xbf16>
    %50 = vector.extract_strided_slice %45 {offsets = [0, 0, 128], sizes = [2, 16, 128], strides = [1, 1, 1]} : vector<2x16x256xbf16> to vector<2x16x128xbf16>
    %cst_25 = arith.constant dense<0.000000e+00> : vector<2x8x16xf32>
    %51 = tpu.matmul %49, %50, %cst_25 {dimension_numbers = #tpu.dot_dimension_numbers<[2], [2], [1], [1], [0, 0, 0, 1, 1, 1], [0], [0]>} : vector<2x8x128xbf16>, vector<2x16x128xbf16>, vector<2x8x16xf32> -> vector<2x8x16xf32>
    %52 = vector.shape_cast %48 : vector<2x8x16xf32> to vector<2x128xf32>
    %53 = vector.shape_cast %51 : vector<2x8x16xf32> to vector<2x128xf32>
    %54 = tpu.concatenate %52, %53 in 1 : vector<2x128xf32>, vector<2x128xf32> -> vector<2x256xf32>
    %55 = vector.shape_cast %54 : vector<2x256xf32> to vector<2x1x256xf32>
    %c0_26 = arith.constant 0 : index
    %c0_27 = arith.constant 0 : index
    %c0_28 = arith.constant 0 : index
    %56 = vector.load %arg9[%c0_26, %c0_27, %c0_28] : memref<2x1x256xf32, #tpu.memory_space<vmem>>, vector<2x1x256xf32>
    tpu.vector_store %arg9[%c0_26, %c0_27, %c0_28], %55 {strides = array<i32>} : memref<2x1x256xf32, #tpu.memory_space<vmem>>, vector<2x1x256xf32>,
    return
  }
  func.func @transform_0(%arg0: i32) -> (i32, i32, i32) {
    %c0_i32 = arith.constant 0 : i32
    %c0_i32_0 = arith.constant 0 : i32
    %c0_i32_1 = arith.constant 0 : i32
    return %arg0, %c0_i32, %c0_i32_0 : i32, i32, i32
  }
  func.func @transform_1(%arg0: i32) -> (i32, i32, i32) {
    %c0_i32 = arith.constant 0 : i32
    %c0_i32_0 = arith.constant 0 : i32
    %c0_i32_1 = arith.constant 0 : i32
    return %arg0, %c0_i32, %c0_i32_0 : i32, i32, i32
  }
  func.func @transform_2(%arg0: i32) -> (i32, i32) {
    %c0_i32 = arith.constant 0 : i32
    %c0_i32_0 = arith.constant 0 : i32
    %c0_i32_1 = arith.constant 0 : i32
    return %c0_i32, %c0_i32_0 : i32, i32
  }
  func.func @transform_3(%arg0: i32) -> (i32, i32) {
    %c0_i32 = arith.constant 0 : i32
    %c0_i32_0 = arith.constant 0 : i32
    %c0_i32_1 = arith.constant 0 : i32
    return %c0_i32, %c0_i32_0 : i32, i32
  }
  func.func @transform_4(%arg0: i32) -> (i32, i32) {
    %c0_i32 = arith.constant 0 : i32
    %c0_i32_0 = arith.constant 0 : i32
    %c0_i32_1 = arith.constant 0 : i32
    return %c0_i32, %c0_i32_0 : i32, i32
  }
  func.func @transform_5(%arg0: i32) -> (i32, i32) {
    %c0_i32 = arith.constant 0 : i32
    %c0_i32_0 = arith.constant 0 : i32
    %c0_i32_1 = arith.constant 0 : i32
    return %c0_i32, %c0_i32_0 : i32, i32
  }
  func.func @transform_6(%arg0: i32) -> (i32, i32) {
    %c0_i32 = arith.constant 0 : i32
    %c0_i32_0 = arith.constant 0 : i32
    %c0_i32_1 = arith.constant 0 : i32
    return %c0_i32, %c0_i32_0 : i32, i32
  }
  func.func @transform_7(%arg0: i32) -> (i32, i32) {
    %c0_i32 = arith.constant 0 : i32
    %c0_i32_0 = arith.constant 0 : i32
    %c0_i32_1 = arith.constant 0 : i32
    return %c0_i32, %c0_i32_0 : i32, i32
  }
  func.func @transform_8(%arg0: i32) -> (i32, i32, i32) {
    %c0_i32 = arith.constant 0 : i32
    %c0_i32_0 = arith.constant 0 : i32
    %c0_i32_1 = arith.constant 0 : i32
    return %arg0, %c0_i32, %c0_i32_0 : i32, i32, i32
  }
}

</mosaic_0001>

<llo_original>
// kernel: tpu_custom_call.1
$region0: #{tpu_custom_call.1}
  #allocation0 [shape = 'u32[]', space=smem, size = 0x4, offset = 0x4, fixed_abs, tag = 'smem constant byte address 0x4 - core index']
  #allocation1 [shape = 'u32[144,128]{1,0:T(1,128)}', space=vmem, size = 0x12000, scoped, tag = 'internal scratch']
  %s0 = inlined_call_operand.hbm [shape: bf16[2,8,128], index: 0, kind: input, shape index: {}]
  %s1 = inlined_call_operand.hbm [shape: bf16[2,16,128], index: 1, kind: input, shape index: {}]
  %s2 = inlined_call_operand.vmem [shape: f32[1,128], index: 2, kind: input, shape index: {}]
  %s3 = inlined_call_operand.vmem [shape: f32[1,128], index: 3, kind: input, shape index: {}]
  %s4 = inlined_call_operand.hbm [shape: bf16[128,256], index: 4, kind: input, shape index: {}]
  %s5 = inlined_call_operand.vmem [shape: f32[1,256], index: 5, kind: input, shape index: {}]
  %s6 = inlined_call_operand.hbm [shape: bf16[128,256], index: 6, kind: input, shape index: {}]
  %s7 = inlined_call_operand.vmem [shape: f32[1,256], index: 7, kind: input, shape index: {}]
  %s8 = inlined_call_operand.hbm [shape: f32[2,1,256], index: 8, kind: output, shape index: {}]
  %s9 = sld [smem:[#allocation0]]
  $region58: #{tpu_custom_call.1} parent=0
    _
  %s11 = ssub.s32 1, %s9
  %s12 = scalar_select 0, %s11, %s9
  $region1: #{tpu_custom_call.1} parent=0
    #allocation2 [shape = 'u8[4096]{0}', space=vmem, size = 0x1000, scoped, tag = 'input window, operand 0, single buffered']
    #allocation3 [shape = 's32[1]{0}', space=sflag, size = 0x4, scoped, tag = 'scoped memory for tpu_custom_call.1']
    #allocation4 [shape = 's32[1]{0}', space=sflag, size = 0x4, scoped, tag = 'scoped memory for tpu_custom_call.1']
    #allocation5 [shape = 'u8[8192]{0}', space=vmem, size = 0x2000, scoped, tag = 'input window, operand 1, single buffered']
    #allocation6 [shape = 's32[1]{0}', space=sflag, size = 0x4, scoped, tag = 'scoped memory for tpu_custom_call.1']
    #allocation7 [shape = 'u8[65536]{0}', space=vmem, size = 0x10000, scoped, tag = 'input window, operand 4, single buffered']
    #allocation8 [shape = 'u8[65536]{0}', space=vmem, size = 0x10000, scoped, tag = 'input window, operand 6, single buffered']
    #allocation9 [shape = 's32[1]{0}', space=sflag, size = 0x4, scoped, tag = 'scoped memory for tpu_custom_call.1']
    #allocation10 [shape = 'u8[2048]{0}', space=vmem, size = 0x800, scoped, tag = 'output window, operand 0, single buffered']
    %13 = vsyncpa [#allocation3], 0
    %14 = vsyncpa [#allocation6], 0
    %15 = vsyncpa [#allocation9], 0
    %16 = vsyncpa [#allocation4], 0
    // Predicated region
    $region2: #{tpu_custom_call.1} parent=1 // pred_check
      _
    $region3: #{tpu_custom_call.1} parent=1 // pred_check_branch
      %18 = sbr.rel (0) target = $region5
    $region4: #{tpu_custom_call.1} parent=1 // pred_region
      %s20 = ssub.s32 128, 128
      %21 = vsyncadd [#allocation3], %s20
      %s22 = sshll.u32 [#allocation2], 4
      %s23 = int_to_ptr.vmem [resolvable:$true] %s22
      %28 = dma.hbm_to_vmem [thread:$0]  %s0, 128, %s23, [#allocation3], 64, 64, 4
    $region5: #{tpu_custom_call.1} parent=1 // pred_fallthru
      _
    // Predicated region
    $region6: #{tpu_custom_call.1} parent=1 // pred_check
      _
    $region7: #{tpu_custom_call.1} parent=1 // pred_check_branch
      %30 = sbr.rel (0) target = $region9
    $region8: #{tpu_custom_call.1} parent=1 // pred_region
      %s32 = ssub.s32 256, 256
      %33 = vsyncadd [#allocation6], %s32
      %s34 = sshll.u32 [#allocation5], 4
      %s35 = int_to_ptr.vmem [resolvable:$true] %s34
      %40 = dma.hbm_to_vmem [thread:$0]  %s1, 256, %s35, [#allocation6], 64, 64, 4
    $region9: #{tpu_custom_call.1} parent=1 // pred_fallthru
      _
    // Predicated region
    $region10: #{tpu_custom_call.1} parent=1 // pred_check
      _
    $region11: #{tpu_custom_call.1} parent=1 // pred_check_branch
      %42 = sbr.rel (0) target = $region13
    $region12: #{tpu_custom_call.1} parent=1 // pred_region
      _
    $region13: #{tpu_custom_call.1} parent=1 // pred_fallthru
      _
    // Predicated region
    $region14: #{tpu_custom_call.1} parent=1 // pred_check
      _
    $region15: #{tpu_custom_call.1} parent=1 // pred_check_branch
      %44 = sbr.rel (0) target = $region17
    $region16: #{tpu_custom_call.1} parent=1 // pred_region
      _
    $region17: #{tpu_custom_call.1} parent=1 // pred_fallthru
      _
    // Predicated region
    $region18: #{tpu_custom_call.1} parent=1 // pred_check
      _
    $region19: #{tpu_custom_call.1} parent=1 // pred_check_branch
      %46 = sbr.rel (0) target = $region21
    $region20: #{tpu_custom_call.1} parent=1 // pred_region
      %s48 = ssub.s32 2048, 2048
      %49 = vsyncadd [#allocation6], %s48
      %s50 = sshll.u32 [#allocation7], 4
      %s51 = int_to_ptr.vmem [resolvable:$true] %s50
      %56 = dma.hbm_to_vmem [thread:$0]  %s4, 2048, %s51, [#allocation6], 128, 128, 8
    $region21: #{tpu_custom_call.1} parent=1 // pred_fallthru
      _
    // Predicated region
    $region22: #{tpu_custom_call.1} parent=1 // pred_check
      _
    $region23: #{tpu_custom_call.1} parent=1 // pred_check_branch
      %58 = sbr.rel (0) target = $region25
    $region24: #{tpu_custom_call.1} parent=1 // pred_region
      _
    $region25: #{tpu_custom_call.1} parent=1 // pred_fallthru
      _
    // Predicated region
    $region26: #{tpu_custom_call.1} parent=1 // pred_check
      _
    $region27: #{tpu_custom_call.1} parent=1 // pred_check_branch
      %60 = sbr.rel (0) target = $region29
    $region28: #{tpu_custom_call.1} parent=1 // pred_region
      %s62 = ssub.s32 2048, 2048
      %63 = vsyncadd [#allocation9], %s62
      %s64 = sshll.u32 [#allocation8], 4
      %s65 = int_to_ptr.vmem [resolvable:$true] %s64
      %70 = dma.hbm_to_vmem [thread:$0]  %s6, 2048, %s65, [#allocation9], 128, 128, 8
    $region29: #{tpu_custom_call.1} parent=1 // pred_fallthru
      _
    // Predicated region
    $region30: #{tpu_custom_call.1} parent=1 // pred_check
      _
    $region31: #{tpu_custom_call.1} parent=1 // pred_check_branch
      %72 = sbr.rel (0) target = $region33
    $region32: #{tpu_custom_call.1} parent=1 // pred_region
      _
    $region33: #{tpu_custom_call.1} parent=1 // pred_fallthru
      _
    // Predicated region
    $region34: #{tpu_custom_call.1} parent=1 // pred_check
      _
    $region35: #{tpu_custom_call.1} parent=1 // pred_check_branch
      %74 = sbr.rel (0) target = $region37
    $region36: #{tpu_custom_call.1} parent=1 // pred_region
      %75 = dma.done [#allocation3], 128
    $region37: #{tpu_custom_call.1} parent=1 // pred_fallthru
      _
    // Predicated region
    $region38: #{tpu_custom_call.1} parent=1 // pred_check
      _
    $region39: #{tpu_custom_call.1} parent=1 // pred_check_branch
      %77 = sbr.rel (0) target = $region41
    $region40: #{tpu_custom_call.1} parent=1 // pred_region
      %78 = dma.done [#allocation6], 256
    $region41: #{tpu_custom_call.1} parent=1 // pred_fallthru
      _
    // Predicated region
    $region42: #{tpu_custom_call.1} parent=1 // pred_check
      _
    $region43: #{tpu_custom_call.1} parent=1 // pred_check_branch
      %80 = sbr.rel (0) target = $region45
    $region44: #{tpu_custom_call.1} parent=1 // pred_region
      %81 = dma.done [#allocation6], 2048
    $region45: #{tpu_custom_call.1} parent=1 // pred_fallthru
      _
    // Predicated region
    $region46: #{tpu_custom_call.1} parent=1 // pred_check
      _
    $region47: #{tpu_custom_call.1} parent=1 // pred_check_branch
      %83 = sbr.rel (0) target = $region49
    $region48: #{tpu_custom_call.1} parent=1 // pred_region
      %84 = dma.done [#allocation9], 2048
    $region49: #{tpu_custom_call.1} parent=1 // pred_fallthru
      _
    %v86 = vld [vmem:[#allocation5] sm:$0xf]
    %v87 = vld [vmem:[#allocation5 + $0x4] sm:$0xf]
    %v88 = vld [vmem:[#allocation5 + $0x8] sm:$0xf]
    %v89 = vld [vmem:[#allocation5 + $0xc] sm:$0xf]
    %v90 = vunpack.c.l.bf16 %v86
    %v91 = vunpack.c.l.bf16 %v87
    %v92 = vunpack.c.l.bf16 %v88
    %v93 = vunpack.c.l.bf16 %v89
    %94 = vadd.xlane.f32.xlu0 %v90
    %v95 = vpop.xlane.xlu0 %94
    %96 = vadd.xlane.f32.xlu0 %v91
    %v97 = vpop.xlane.xlu0 %96
    %98 = vadd.xlane.f32.xlu0 %v92
    %v99 = vpop.xlane.xlu0 %98
    %100 = vadd.xlane.f32.xlu0 %v93
    %v101 = vpop.xlane.xlu0 %100
    %v102 = vrcp.pop 128.0
    %v103 = vmul.f32 %v95, %v102
    %v104 = vmul.f32 %v97, %v102
    %v105 = vmul.f32 %v99, %v102
    %v106 = vmul.f32 %v101, %v102
    %v107 = vmul.f32 %v90, %v90
    %v108 = vmul.f32 %v91, %v91
    %v109 = vmul.f32 %v92, %v92
    %v110 = vmul.f32 %v93, %v93
    %111 = vadd.xlane.f32.xlu0 %v107
    %v112 = vpop.xlane.xlu0 %111
    %113 = vadd.xlane.f32.xlu0 %v108
    %v114 = vpop.xlane.xlu0 %113
    %115 = vadd.xlane.f32.xlu0 %v109
    %v116 = vpop.xlane.xlu0 %115
    %117 = vadd.xlane.f32.xlu0 %v110
    %v118 = vpop.xlane.xlu0 %117
    %v119 = vmul.f32 %v112, %v102
    %v120 = vmul.f32 %v114, %v102
    %v121 = vmul.f32 %v116, %v102
    %v122 = vmul.f32 %v118, %v102
    %v123 = vmul.f32 %v103, %v103
    %v124 = vmul.f32 %v104, %v104
    %v125 = vmul.f32 %v105, %v105
    %v126 = vmul.f32 %v106, %v106
    %v127 = vsub.f32 %v119, %v123
    %v128 = vsub.f32 %v120, %v124
    %v129 = vsub.f32 %v121, %v125
    %v130 = vsub.f32 %v122, %v126
    %v131 = vmax.f32 %v127, 0.0
    %v132 = vmax.f32 %v128, 0.0
    %v133 = vmax.f32 %v129, 0.0
    %v134 = vmax.f32 %v130, 0.0
    %v135 = vsub.f32 %v90, %v103
    %v136 = vsub.f32 %v91, %v104
    %v137 = vsub.f32 %v92, %v105
    %v138 = vsub.f32 %v93, %v106
    %v139 = vadd.f32 %v131, 1e-12
    %v140 = vadd.f32 %v132, 1e-12
    %v141 = vadd.f32 %v133, 1e-12
    %v142 = vadd.f32 %v134, 1e-12
    %v143 = vrsqrt.pop %v139
    %v144 = vrsqrt.pop %v140
    %v145 = vrsqrt.pop %v141
    %v146 = vrsqrt.pop %v142
    %v147 = vmul.f32 %v135, %v143
    %v148 = vmul.f32 %v136, %v144
    %v149 = vmul.f32 %v137, %v145
    %v150 = vmul.f32 %v138, %v146
    %v151 = vld [vmem:[%s2] sm:$0x1]
    %v153 = vlaneseq
    %v154 = vshrl.u32 %v153, 7
    %v155 = vsub.s32 0, %v154
    %v156 = vrot.slane %v151, %v155
    %v158 = vmul.f32 %v147, %v156
    %v159 = vmul.f32 %v148, %v156
    %v160 = vmul.f32 %v149, %v156
    %v161 = vmul.f32 %v150, %v156
    %v162 = vld [vmem:[%s3] sm:$0x1]
    %v164 = vlaneseq
    %v165 = vshrl.u32 %v164, 7
    %v166 = vsub.s32 0, %v165
    %v167 = vrot.slane %v162, %v166
    %v169 = vadd.f32 %v158, %v167
    %v170 = vadd.f32 %v159, %v167
    %v171 = vadd.f32 %v160, %v167
    %v172 = vadd.f32 %v161, %v167
    %v173 = vld [vmem:[#allocation2] sm:$0xf]
    %v174 = vld [vmem:[#allocation2 + $0x4] sm:$0xf]
    %v175 = vld [vmem:[#allocation7] sm:$0xff]
    %v176 = vld [vmem:[#allocation7 + $0x8] sm:$0xff]
    %v177 = vld [vmem:[#allocation7 + $0x10] sm:$0xff]
    %v178 = vld [vmem:[#allocation7 + $0x18] sm:$0xff]
    %v179 = vld [vmem:[#allocation7 + $0x20] sm:$0xff]
    %v180 = vld [vmem:[#allocation7 + $0x28] sm:$0xff]
    %v181 = vld [vmem:[#allocation7 + $0x30] sm:$0xff]
    %v182 = vld [vmem:[#allocation7 + $0x38] sm:$0xff]
    %v183 = vld [vmem:[#allocation7 + $0x40] sm:$0xff]
    %v184 = vld [vmem:[#allocation7 + $0x48] sm:$0xff]
    %v185 = vld [vmem:[#allocation7 + $0x50] sm:$0xff]
    %v186 = vld [vmem:[#allocation7 + $0x58] sm:$0xff]
    %v187 = vld [vmem:[#allocation7 + $0x60] sm:$0xff]
    %v188 = vld [vmem:[#allocation7 + $0x68] sm:$0xff]
    %v189 = vld [vmem:[#allocation7 + $0x70] sm:$0xff]
    %v190 = vld [vmem:[#allocation7 + $0x78] sm:$0xff]
    %v191 = vld [vmem:[%s5] sm:$0x3]
    %v193 = vlaneseq
    %v194 = vshrl.u32 %v193, 7
    %v195 = vsub.s32 0, %v194
    %v196 = vrot.slane %v191, %v195
    %v197 = vlaneseq
    %v198 = vshrl.u32 %v197, 7
    %v199 = vsub.s32 1, %v198
    %v200 = vrot.slane %v191, %v199
    %v205 = vunpack.c.l.b16 %v173
    %v206 = vunpack.c.l.b16 %v174
    %v207 = vpack.c.b16 %v206, %v205
    %v225 = vunpack.c.l.b16 %v175
    %v226 = vunpack.c.h.b16 %v175
    %v227 = vunpack.c.l.b16 %v176
    %v228 = vunpack.c.h.b16 %v176
    %v229 = vunpack.c.l.b16 %v177
    %v230 = vunpack.c.h.b16 %v177
    %v231 = vunpack.c.l.b16 %v178
    %v232 = vunpack.c.h.b16 %v178
    %v233 = vunpack.c.l.b16 %v179
    %v234 = vunpack.c.h.b16 %v179
    %v235 = vunpack.c.l.b16 %v180
    %v236 = vunpack.c.h.b16 %v180
    %v237 = vunpack.c.l.b16 %v181
    %v238 = vunpack.c.h.b16 %v181
    %v239 = vunpack.c.l.b16 %v182
    %v240 = vunpack.c.h.b16 %v182
    %v241 = vunpack.c.l.b16 %v183
    %v242 = vunpack.c.h.b16 %v183
    %v243 = vunpack.c.l.b16 %v184
    %v244 = vunpack.c.h.b16 %v184
    %v245 = vunpack.c.l.b16 %v185
    %v246 = vunpack.c.h.b16 %v185
    %v247 = vunpack.c.l.b16 %v186
    %v248 = vunpack.c.h.b16 %v186
    %v249 = vunpack.c.l.b16 %v187
    %v250 = vunpack.c.h.b16 %v187
    %v251 = vunpack.c.l.b16 %v188
    %v252 = vunpack.c.h.b16 %v188
    %v253 = vunpack.c.l.b16 %v189
    %v254 = vunpack.c.h.b16 %v189
    %v255 = vunpack.c.l.b16 %v190
    %v256 = vunpack.c.h.b16 %v190
    %v257 = vpack.c.b16 %v227, %v225
    %v258 = vpack.c.b16 %v228, %v226
    %v259 = vpack.c.b16 %v231, %v229
    %v260 = vpack.c.b16 %v232, %v230
    %v261 = vpack.c.b16 %v235, %v233
    %v262 = vpack.c.b16 %v236, %v234
    %v263 = vpack.c.b16 %v239, %v237
    %v264 = vpack.c.b16 %v240, %v238
    %v265 = vpack.c.b16 %v243, %v241
    %v266 = vpack.c.b16 %v244, %v242
    %v267 = vpack.c.b16 %v247, %v245
    %v268 = vpack.c.b16 %v248, %v246
    %v269 = vpack.c.b16 %v251, %v249
    %v270 = vpack.c.b16 %v252, %v250
    %v271 = vpack.c.b16 %v255, %v253
    %v272 = vpack.c.b16 %v256, %v254
    %289 = vmatprep.subr.bf16.mxu0 %v258
    %290 = vmatpush1.bf16.msra.mxu0 %v257
    %291 = vmatprep.subr.bf16.mxu0 %v260
    %292 = vmatpush1.bf16.msra.mxu0 %v259
    %293 = vmatprep.subr.bf16.mxu0 %v262
    %294 = vmatpush1.bf16.msra.mxu0 %v261
    %295 = vmatprep.subr.bf16.mxu0 %v264
    %296 = vmatpush1.bf16.msra.mxu0 %v263
    %297 = vmatprep.subr.bf16.mxu0 %v266
    %298 = vmatpush1.bf16.msra.mxu0 %v265
    %299 = vmatprep.subr.bf16.mxu0 %v268
    %300 = vmatpush1.bf16.msra.mxu0 %v267
    %301 = vmatprep.subr.bf16.mxu0 %v270
    %302 = vmatpush1.bf16.msra.mxu0 %v269
    %303 = vmatprep.subr.bf16.mxu0 %v272
    %304 = vmatpush1.bf16.msra.mxu0 %v271
    %305 = vmatprep.subr.bf16.mxu0 0
    %306 = vmatpush1.bf16.msra.mxu0 0
    %307 = vmatprep.subr.bf16.mxu0 0
    %308 = vmatpush1.bf16.msra.mxu0 0
    %309 = vmatprep.subr.bf16.mxu0 0
    %310 = vmatpush1.bf16.msra.mxu0 0
    %311 = vmatprep.subr.bf16.mxu0 0
    %312 = vmatpush1.bf16.msra.mxu0 0
    %313 = vmatprep.subr.bf16.mxu0 0
    %314 = vmatpush1.bf16.msra.mxu0 0
    %315 = vmatprep.subr.bf16.mxu0 0
    %316 = vmatpush1.bf16.msra.mxu0 0
    %317 = vmatprep.subr.bf16.mxu0 0
    %318 = vmatpush1.bf16.msra.mxu0 0
    %319 = vmatprep.subr.bf16.mxu0 0
    %320 = vmatpush1.bf16.msra.mxu0 0
    %321 = vmatprep.mubr.bf16.mxu0 0
    %322 = vmatmul.mubr.bf16.gmra.mrb[0].mxu0 %v207
    %v323 = vpop.f32.mrb[0].mxu0
    %v324 = vadd.f32 %v196, %v323
    %v325 = vpop.f32.mrb[0].mxu0
    %v326 = vadd.f32 %v200, %v325
    %v327 = vpop.f32.mrb[0].mxu0
    %v328 = vadd.f32 %v196, %v327
    %v329 = vpop.f32.mrb[0].mxu0
    %v330 = vadd.f32 %v200, %v329
    %331 = vdwg.mxu0
    %v332 = vpack.c.bf16 %v170, %v169
    %v333 = vpack.c.bf16 %v172, %v171
    %v334 = vld [vmem:[#allocation8] sm:$0xff]
    %v335 = vld [vmem:[#allocation8 + $0x8] sm:$0xff]
    %v336 = vld [vmem:[#allocation8 + $0x10] sm:$0xff]
    %v337 = vld [vmem:[#allocation8 + $0x18] sm:$0xff]
    %v338 = vld [vmem:[#allocation8 + $0x20] sm:$0xff]
    %v339 = vld [vmem:[#allocation8 + $0x28] sm:$0xff]
    %v340 = vld [vmem:[#allocation8 + $0x30] sm:$0xff]
    %v341 = vld [vmem:[#allocation8 + $0x38] sm:$0xff]
    %v342 = vld [vmem:[#allocation8 + $0x40] sm:$0xff]
    %v343 = vld [vmem:[#allocation8 + $0x48] sm:$0xff]
    %v344 = vld [vmem:[#allocation8 + $0x50] sm:$0xff]
    %v345 = vld [vmem:[#allocation8 + $0x58] sm:$0xff]
    %v346 = vld [vmem:[#allocation8 + $0x60] sm:$0xff]
    %v347 = vld [vmem:[#allocation8 + $0x68] sm:$0xff]
    %v348 = vld [vmem:[#allocation8 + $0x70] sm:$0xff]
    %v349 = vld [vmem:[#allocation8 + $0x78] sm:$0xff]
    %v350 = vld [vmem:[%s7] sm:$0x3]
    %v352 = vlaneseq
    %v353 = vshrl.u32 %v352, 7
    %v354 = vsub.s32 0, %v353
    %v355 = vrot.slane %v350, %v354
    %v356 = vlaneseq
    %v357 = vshrl.u32 %v356, 7
    %v358 = vsub.s32 1, %v357
    %v359 = vrot.slane %v350, %v358
    %v378 = vunpack.c.l.b16 %v334
    %v379 = vunpack.c.h.b16 %v334
    %v380 = vunpack.c.l.b16 %v335
    %v381 = vunpack.c.h.b16 %v335
    %v382 = vunpack.c.l.b16 %v336
    %v383 = vunpack.c.h.b16 %v336
    %v384 = vunpack.c.l.b16 %v337
    %v385 = vunpack.c.h.b16 %v337
    %v386 = vunpack.c.l.b16 %v338
    %v387 = vunpack.c.h.b16 %v338
    %v388 = vunpack.c.l.b16 %v339
    %v389 = vunpack.c.h.b16 %v339
    %v390 = vunpack.c.l.b16 %v340
    %v391 = vunpack.c.h.b16 %v340
    %v392 = vunpack.c.l.b16 %v341
    %v393 = vunpack.c.h.b16 %v341
    %v394 = vunpack.c.l.b16 %v342
    %v395 = vunpack.c.h.b16 %v342
    %v396 = vunpack.c.l.b16 %v343
    %v397 = vunpack.c.h.b16 %v343
    %v398 = vunpack.c.l.b16 %v344
    %v399 = vunpack.c.h.b16 %v344
    %v400 = vunpack.c.l.b16 %v345
    %v401 = vunpack.c.h.b16 %v345
    %v402 = vunpack.c.l.b16 %v346
    %v403 = vunpack.c.h.b16 %v346
    %v404 = vunpack.c.l.b16 %v347
    %v405 = vunpack.c.h.b16 %v347
    %v406 = vunpack.c.l.b16 %v348
    %v407 = vunpack.c.h.b16 %v348
    %v408 = vunpack.c.l.b16 %v349
    %v409 = vunpack.c.h.b16 %v349
    %v410 = vpack.c.b16 %v380, %v378
    %v411 = vpack.c.b16 %v381, %v379
    %v412 = vpack.c.b16 %v384, %v382
    %v413 = vpack.c.b16 %v385, %v383
    %v414 = vpack.c.b16 %v388, %v386
    %v415 = vpack.c.b16 %v389, %v387
    %v416 = vpack.c.b16 %v392, %v390
    %v417 = vpack.c.b16 %v393, %v391
    %v418 = vpack.c.b16 %v396, %v394
    %v419 = vpack.c.b16 %v397, %v395
    %v420 = vpack.c.b16 %v400, %v398
    %v421 = vpack.c.b16 %v401, %v399
    %v422 = vpack.c.b16 %v404, %v402
    %v423 = vpack.c.b16 %v405, %v403
    %v424 = vpack.c.b16 %v408, %v406
    %v425 = vpack.c.b16 %v409, %v407
    %442 = vmatprep.subr.bf16.mxu0 %v411
    %443 = vmatpush1.bf16.msra.mxu0 %v410
    %444 = vmatprep.subr.bf16.mxu0 %v413
    %445 = vmatpush1.bf16.msra.mxu0 %v412
    %446 = vmatprep.subr.bf16.mxu0 %v415
    %447 = vmatpush1.bf16.msra.mxu0 %v414
    %448 = vmatprep.subr.bf16.mxu0 %v417
    %449 = vmatpush1.bf16.msra.mxu0 %v416
    %450 = vmatprep.subr.bf16.mxu0 %v419
    %451 = vmatpush1.bf16.msra.mxu0 %v418
    %452 = vmatprep.subr.bf16.mxu0 %v421
    %453 = vmatpush1.bf16.msra.mxu0 %v420
    %454 = vmatprep.subr.bf16.mxu0 %v423
    %455 = vmatpush1.bf16.msra.mxu0 %v422
    %456 = vmatprep.subr.bf16.mxu0 %v425
    %457 = vmatpush1.bf16.msra.mxu0 %v424
    %458 = vmatprep.subr.bf16.mxu0 0
    %459 = vmatpush1.bf16.msra.mxu0 0
    %460 = vmatprep.subr.bf16.mxu0 0
    %461 = vmatpush1.bf16.msra.mxu0 0
    %462 = vmatprep.subr.bf16.mxu0 0
    %463 = vmatpush1.bf16.msra.mxu0 0
    %464 = vmatprep.subr.bf16.mxu0 0
    %465 = vmatpush1.bf16.msra.mxu0 0
    %466 = vmatprep.subr.bf16.mxu0 0
    %467 = vmatpush1.bf16.msra.mxu0 0
    %468 = vmatprep.subr.bf16.mxu0 0
    %469 = vmatpush1.bf16.msra.mxu0 0
    %470 = vmatprep.subr.bf16.mxu0 0
    %471 = vmatpush1.bf16.msra.mxu0 0
    %472 = vmatprep.subr.bf16.mxu0 0
    %473 = vmatpush1.bf16.msra.mxu0 0
    %474 = vmatprep.mubr.bf16.mxu0 0
    %475 = vmatmul.mubr.bf16.gmra.mrb[0].mxu0 %v332
    %v476 = vpop.f32.mrb[0].mxu0
    %v477 = vadd.f32 %v355, %v476
    %v478 = vpop.f32.mrb[0].mxu0
    %v479 = vadd.f32 %v359, %v478
    %v480 = vpop.f32.mrb[0].mxu0
    %v481 = vadd.f32 %v355, %v480
    %v482 = vpop.f32.mrb[0].mxu0
    %v483 = vadd.f32 %v359, %v482
    %484 = vmatprep.mubr.bf16.mxu0 0
    %485 = vmatmul.mubr.bf16.gmra.mrb[0].mxu0 %v333
    %v486 = vpop.f32.mrb[0].mxu0
    %v487 = vadd.f32 %v355, %v486
    %v488 = vpop.f32.mrb[0].mxu0
    %v489 = vadd.f32 %v359, %v488
    %v490 = vpop.f32.mrb[0].mxu0
    %v491 = vadd.f32 %v355, %v490
    %v492 = vpop.f32.mrb[0].mxu0
    %v493 = vadd.f32 %v359, %v492
    %494 = vdwg.mxu0
    %v495 = vpack.c.bf16 %v328, %v324
    %v496 = vpack.c.bf16 %v330, %v326
    %v499 = vunpack.c.l.b16 %v495
    %v500 = vunpack.c.l.b16 %v496
    %v501 = vunpack.c.h.b16 %v495
    %v502 = vunpack.c.h.b16 %v496
    %v503 = vpack.c.b16 %v500, %v499
    %v504 = vpack.c.b16 %v502, %v501
    %v507 = vpack.c.bf16 %v481, %v477
    %v508 = vpack.c.bf16 %v483, %v479
    %v509 = vpack.c.bf16 %v491, %v487
    %v510 = vpack.c.bf16 %v493, %v489
    %511 = vmatprep.subr.bf16.mxu0 0
    %512 = vmatpush1.bf16.xpose.msra.mxu0 %v507
    %513 = vmatprep.subr.bf16.mxu0 0
    %514 = vmatpush1.bf16.xpose.msra.mxu0 0
    %515 = vmatprep.subr.bf16.mxu0 0
    %516 = vmatpush1.bf16.xpose.msra.mxu0 0
    %517 = vmatprep.subr.bf16.mxu0 0
    %518 = vmatpush1.bf16.xpose.msra.mxu0 0
    %519 = vmatprep.subr.bf16.mxu0 0
    %520 = vmatpush1.bf16.xpose.msra.mxu0 0
    %521 = vmatprep.subr.bf16.mxu0 0
    %522 = vmatpush1.bf16.xpose.msra.mxu0 0
    %523 = vmatprep.subr.bf16.mxu0 0
    %524 = vmatpush1.bf16.xpose.msra.mxu0 0
    %525 = vmatprep.subr.bf16.mxu0 0
    %526 = vmatpush1.bf16.xpose.msra.mxu0 0
    %527 = vmatprep.subr.bf16.mxu0 0
    %528 = vmatpush1.bf16.xpose.msra.mxu0 0
    %529 = vmatprep.subr.bf16.mxu0 0
    %530 = vmatpush1.bf16.xpose.msra.mxu0 0
    %531 = vmatprep.subr.bf16.mxu0 0
    %532 = vmatpush1.bf16.xpose.msra.mxu0 0
    %533 = vmatprep.subr.bf16.mxu0 0
    %534 = vmatpush1.bf16.xpose.msra.mxu0 0
    %535 = vmatprep.subr.bf16.mxu0 0
    %536 = vmatpush1.bf16.xpose.msra.mxu0 0
    %537 = vmatprep.subr.bf16.mxu0 0
    %538 = vmatpush1.bf16.xpose.msra.mxu0 0
    %539 = vmatprep.subr.bf16.mxu0 0
    %540 = vmatpush1.bf16.xpose.msra.mxu0 0
    %541 = vmatprep.subr.bf16.mxu0 0
    %542 = vmatpush1.bf16.xpose.msra.mxu0 0
    %543 = vmatprep.mubr.bf16.mxu0 0
    %544 = vmatmul.mubr.bf16.gmra.mrb[0].mxu0 %v503
    %v545 = vpop.f32.mrb[0].mxu0
    %v546 = vadd.f32 0.0, %v545
    %v547 = vpop.f32.mrb[0].mxu0
    %v548 = vpop.f32.mrb[0].mxu0
    %v549 = vpop.f32.mrb[0].mxu0
    %550 = vdwg.mxu0
    %551 = vmatprep.subr.bf16.mxu0 0
    %552 = vmatpush1.bf16.xpose.msra.mxu0 %v509
    %553 = vmatprep.subr.bf16.mxu0 0
    %554 = vmatpush1.bf16.xpose.msra.mxu0 0
    %555 = vmatprep.subr.bf16.mxu0 0
    %556 = vmatpush1.bf16.xpose.msra.mxu0 0
    %557 = vmatprep.subr.bf16.mxu0 0
    %558 = vmatpush1.bf16.xpose.msra.mxu0 0
    %559 = vmatprep.subr.bf16.mxu0 0
    %560 = vmatpush1.bf16.xpose.msra.mxu0 0
    %561 = vmatprep.subr.bf16.mxu0 0
    %562 = vmatpush1.bf16.xpose.msra.mxu0 0
    %563 = vmatprep.subr.bf16.mxu0 0
    %564 = vmatpush1.bf16.xpose.msra.mxu0 0
    %565 = vmatprep.subr.bf16.mxu0 0
    %566 = vmatpush1.bf16.xpose.msra.mxu0 0
    %567 = vmatprep.subr.bf16.mxu0 0
    %568 = vmatpush1.bf16.xpose.msra.mxu0 0
    %569 = vmatprep.subr.bf16.mxu0 0
    %570 = vmatpush1.bf16.xpose.msra.mxu0 0
    %571 = vmatprep.subr.bf16.mxu0 0
    %572 = vmatpush1.bf16.xpose.msra.mxu0 0
    %573 = vmatprep.subr.bf16.mxu0 0
    %574 = vmatpush1.bf16.xpose.msra.mxu0 0
    %575 = vmatprep.subr.bf16.mxu0 0
    %576 = vmatpush1.bf16.xpose.msra.mxu0 0
    %577 = vmatprep.subr.bf16.mxu0 0
    %578 = vmatpush1.bf16.xpose.msra.mxu0 0
    %579 = vmatprep.subr.bf16.mxu0 0
    %580 = vmatpush1.bf16.xpose.msra.mxu0 0
    %581 = vmatprep.subr.bf16.mxu0 0
    %582 = vmatpush1.bf16.xpose.msra.mxu0 0
    %583 = vmatprep.mubr.bf16.mxu0 0
    %584 = vmatmul.mubr.bf16.gmra.mrb[0].mxu0 %v504
    %v585 = vpop.f32.mrb[0].mxu0
    %v586 = vadd.f32 0.0, %v585
    %v587 = vpop.f32.mrb[0].mxu0
    %v588 = vpop.f32.mrb[0].mxu0
    %v589 = vpop.f32.mrb[0].mxu0
    %590 = vdwg.mxu0
    %v591 = vrot.slane %v503, 4
    %593 = vmatprep.subr.bf16.mxu0 0
    %594 = vmatpush1.bf16.xpose.msra.mxu0 %v508
    %595 = vmatprep.subr.bf16.mxu0 0
    %596 = vmatpush1.bf16.xpose.msra.mxu0 0
    %597 = vmatprep.subr.bf16.mxu0 0
    %598 = vmatpush1.bf16.xpose.msra.mxu0 0
    %599 = vmatprep.subr.bf16.mxu0 0
    %600 = vmatpush1.bf16.xpose.msra.mxu0 0
    %601 = vmatprep.subr.bf16.mxu0 0
    %602 = vmatpush1.bf16.xpose.msra.mxu0 0
    %603 = vmatprep.subr.bf16.mxu0 0
    %604 = vmatpush1.bf16.xpose.msra.mxu0 0
    %605 = vmatprep.subr.bf16.mxu0 0
    %606 = vmatpush1.bf16.xpose.msra.mxu0 0
    %607 = vmatprep.subr.bf16.mxu0 0
    %608 = vmatpush1.bf16.xpose.msra.mxu0 0
    %609 = vmatprep.subr.bf16.mxu0 0
    %610 = vmatpush1.bf16.xpose.msra.mxu0 0
    %611 = vmatprep.subr.bf16.mxu0 0
    %612 = vmatpush1.bf16.xpose.msra.mxu0 0
    %613 = vmatprep.subr.bf16.mxu0 0
    %614 = vmatpush1.bf16.xpose.msra.mxu0 0
    %615 = vmatprep.subr.bf16.mxu0 0
    %616 = vmatpush1.bf16.xpose.msra.mxu0 0
    %617 = vmatprep.subr.bf16.mxu0 0
    %618 = vmatpush1.bf16.xpose.msra.mxu0 0
    %619 = vmatprep.subr.bf16.mxu0 0
    %620 = vmatpush1.bf16.xpose.msra.mxu0 0
    %621 = vmatprep.subr.bf16.mxu0 0
    %622 = vmatpush1.bf16.xpose.msra.mxu0 0
    %623 = vmatprep.subr.bf16.mxu0 0
    %624 = vmatpush1.bf16.xpose.msra.mxu0 0
    %625 = vmatprep.mubr.bf16.mxu0 0
    %626 = vmatmul.mubr.bf16.gmra.mrb[0].mxu0 %v591
    %v627 = vpop.f32.mrb[0].mxu0
    %v628 = vadd.f32 0.0, %v627
    %v629 = vpop.f32.mrb[0].mxu0
    %v630 = vpop.f32.mrb[0].mxu0
    %v631 = vpop.f32.mrb[0].mxu0
    %632 = vdwg.mxu0
    %v633 = vrot.slane %v504, 4
    %635 = vmatprep.subr.bf16.mxu0 0
    %636 = vmatpush1.bf16.xpose.msra.mxu0 %v510
    %637 = vmatprep.subr.bf16.mxu0 0
    %638 = vmatpush1.bf16.xpose.msra.mxu0 0
    %639 = vmatprep.subr.bf16.mxu0 0
    %640 = vmatpush1.bf16.xpose.msra.mxu0 0
    %641 = vmatprep.subr.bf16.mxu0 0
    %642 = vmatpush1.bf16.xpose.msra.mxu0 0
    %643 = vmatprep.subr.bf16.mxu0 0
    %644 = vmatpush1.bf16.xpose.msra.mxu0 0
    %645 = vmatprep.subr.bf16.mxu0 0
    %646 = vmatpush1.bf16.xpose.msra.mxu0 0
    %647 = vmatprep.subr.bf16.mxu0 0
    %648 = vmatpush1.bf16.xpose.msra.mxu0 0
    %649 = vmatprep.subr.bf16.mxu0 0
    %650 = vmatpush1.bf16.xpose.msra.mxu0 0
    %651 = vmatprep.subr.bf16.mxu0 0
    %652 = vmatpush1.bf16.xpose.msra.mxu0 0
    %653 = vmatprep.subr.bf16.mxu0 0
    %654 = vmatpush1.bf16.xpose.msra.mxu0 0
    %655 = vmatprep.subr.bf16.mxu0 0
    %656 = vmatpush1.bf16.xpose.msra.mxu0 0
    %657 = vmatprep.subr.bf16.mxu0 0
    %658 = vmatpush1.bf16.xpose.msra.mxu0 0
    %659 = vmatprep.subr.bf16.mxu0 0
    %660 = vmatpush1.bf16.xpose.msra.mxu0 0
    %661 = vmatprep.subr.bf16.mxu0 0
    %662 = vmatpush1.bf16.xpose.msra.mxu0 0
    %663 = vmatprep.subr.bf16.mxu0 0
    %664 = vmatpush1.bf16.xpose.msra.mxu0 0
    %665 = vmatprep.subr.bf16.mxu0 0
    %666 = vmatpush1.bf16.xpose.msra.mxu0 0
    %667 = vmatprep.mubr.bf16.mxu0 0
    %668 = vmatmul.mubr.bf16.gmra.mrb[0].mxu0 %v633
    %v669 = vpop.f32.mrb[0].mxu0
    %v670 = vadd.f32 0.0, %v669
    %v671 = vpop.f32.mrb[0].mxu0
    %v672 = vpop.f32.mrb[0].mxu0
    %v673 = vpop.f32.mrb[0].mxu0
    %674 = vdwg.mxu0
    %v675 = vcombine.high %v546, 0.0
    %v677 = vunpack.c.l.s4 1983009808
    %v678 = vunpack.c.0.s8 %v677
    %v679 = vlaneseq
    %v680 = vshrl.u32 %v679, 7
    %v681 = vsub.s32 %v678, %v680
    %v682 = vrot.slane %v546, %v681
    %v684 = vunpack.c.l.s4 1983009808
    %v685 = vunpack.c.0.s8 %v684
    %v686 = vlaneseq
    %v687 = vshrl.u32 %v686, 7
    %v688 = vsub.s32 %v685, %v687
    %v689 = vrot.slane %v675, %v688
    %v690 = vcombine.high %v586, 0.0
    %v692 = vunpack.c.l.s4 1983009808
    %v693 = vunpack.c.0.s8 %v692
    %v694 = vlaneseq
    %v695 = vshrl.u32 %v694, 7
    %v696 = vsub.s32 %v693, %v695
    %v697 = vrot.slane %v586, %v696
    %v699 = vunpack.c.l.s4 1983009808
    %v700 = vunpack.c.0.s8 %v699
    %v701 = vlaneseq
    %v702 = vshrl.u32 %v701, 7
    %v703 = vsub.s32 %v700, %v702
    %v704 = vrot.slane %v690, %v703
    %v705 = vcombine.low %v682, %v697
    %v706 = vcombine.high %v682, %v697
    %v708 = vunpack.c.l.s4 1934713408
    %v709 = vunpack.c.0.s8 %v708
    %v710 = vlaneseq
    %v711 = vshrl.u32 %v710, 7
    %v712 = vsub.s32 %v709, %v711
    %v713 = vrot.slane %v705, %v712
    %v715 = vunpack.c.l.s4 1934713408
    %v716 = vunpack.c.0.s8 %v715
    %v717 = vlaneseq
    %v718 = vshrl.u32 %v717, 7
    %v719 = vsub.s32 %v716, %v718
    %v720 = vrot.slane %v706, %v719
    %v721 = vcombine.low %v689, %v704
    %v722 = vcombine.high %v689, %v704
    %v724 = vunpack.c.l.s4 1934713408
    %v725 = vunpack.c.0.s8 %v724
    %v726 = vlaneseq
    %v727 = vshrl.u32 %v726, 7
    %v728 = vsub.s32 %v725, %v727
    %v729 = vrot.slane %v721, %v728
    %v731 = vunpack.c.l.s4 1934713408
    %v732 = vunpack.c.0.s8 %v731
    %v733 = vlaneseq
    %v734 = vshrl.u32 %v733, 7
    %v735 = vsub.s32 %v732, %v734
    %v736 = vrot.slane %v722, %v735
    %v737 = vcombine.high %v713, 0.0
    %v738 = vcombine.high %v720, 0.0
    %v739 = vcombine.high %v729, 0.0
    %v740 = vcombine.high %v736, 0.0
    %742 = vrot.lane.b32.xlu0 %v737, 16
    %v743 = vpop.permute.xlu0 %742
    %746 = vrot.lane.b32.xlu0 %v720, 32
    %v747 = vpop.permute.xlu0 %746
    %750 = vrot.lane.b32.xlu0 %v738, 48
    %v751 = vpop.permute.xlu0 %750
    %754 = vrot.lane.b32.xlu0 %v729, 64
    %v755 = vpop.permute.xlu0 %754
    %758 = vrot.lane.b32.xlu0 %v739, 80
    %v759 = vpop.permute.xlu0 %758
    %762 = vrot.lane.b32.xlu0 %v736, 96
    %v763 = vpop.permute.xlu0 %762
    %766 = vrot.lane.b32.xlu0 %v740, 112
    %v767 = vpop.permute.xlu0 %766
    %vm769 = vcmask 130048
    %v770 = vsel %vm769, %v713, %v743
    %vm771 = vcmask 261120
    %v772 = vsel %vm771, %v770, %v747
    %vm773 = vcmask 392192
    %v774 = vsel %vm773, %v772, %v751
    %vm775 = vcmask 523264
    %v776 = vsel %vm775, %v774, %v755
    %vm777 = vcmask 654336
    %v778 = vsel %vm777, %v776, %v759
    %vm779 = vcmask 785408
    %v780 = vsel %vm779, %v778, %v763
    %vm781 = vcmask 916480
    %v782 = vsel %vm781, %v780, %v767
    %v783 = vcombine.high %v628, 0.0
    %v785 = vunpack.c.l.s4 1983009808
    %v786 = vunpack.c.0.s8 %v785
    %v787 = vlaneseq
    %v788 = vshrl.u32 %v787, 7
    %v789 = vsub.s32 %v786, %v788
    %v790 = vrot.slane %v628, %v789
    %v792 = vunpack.c.l.s4 1983009808
    %v793 = vunpack.c.0.s8 %v792
    %v794 = vlaneseq
    %v795 = vshrl.u32 %v794, 7
    %v796 = vsub.s32 %v793, %v795
    %v797 = vrot.slane %v783, %v796
    %v798 = vcombine.high %v670, 0.0
    %v800 = vunpack.c.l.s4 1983009808
    %v801 = vunpack.c.0.s8 %v800
    %v802 = vlaneseq
    %v803 = vshrl.u32 %v802, 7
    %v804 = vsub.s32 %v801, %v803
    %v805 = vrot.slane %v670, %v804
    %v807 = vunpack.c.l.s4 1983009808
    %v808 = vunpack.c.0.s8 %v807
    %v809 = vlaneseq
    %v810 = vshrl.u32 %v809, 7
    %v811 = vsub.s32 %v808, %v810
    %v812 = vrot.slane %v798, %v811
    %v813 = vcombine.low %v790, %v805
    %v814 = vcombine.high %v790, %v805
    %v816 = vunpack.c.l.s4 1934713408
    %v817 = vunpack.c.0.s8 %v816
    %v818 = vlaneseq
    %v819 = vshrl.u32 %v818, 7
    %v820 = vsub.s32 %v817, %v819
    %v821 = vrot.slane %v813, %v820
    %v823 = vunpack.c.l.s4 1934713408
    %v824 = vunpack.c.0.s8 %v823
    %v825 = vlaneseq
    %v826 = vshrl.u32 %v825, 7
    %v827 = vsub.s32 %v824, %v826
    %v828 = vrot.slane %v814, %v827
    %v829 = vcombine.low %v797, %v812
    %v830 = vcombine.high %v797, %v812
    %v832 = vunpack.c.l.s4 1934713408
    %v833 = vunpack.c.0.s8 %v832
    %v834 = vlaneseq
    %v835 = vshrl.u32 %v834, 7
    %v836 = vsub.s32 %v833, %v835
    %v837 = vrot.slane %v829, %v836
    %v839 = vunpack.c.l.s4 1934713408
    %v840 = vunpack.c.0.s8 %v839
    %v841 = vlaneseq
    %v842 = vshrl.u32 %v841, 7
    %v843 = vsub.s32 %v840, %v842
    %v844 = vrot.slane %v830, %v843
    %v845 = vcombine.high %v821, 0.0
    %v846 = vcombine.high %v828, 0.0
    %v847 = vcombine.high %v837, 0.0
    %v848 = vcombine.high %v844, 0.0
    %850 = vrot.lane.b32.xlu0 %v845, 16
    %v851 = vpop.permute.xlu0 %850
    %854 = vrot.lane.b32.xlu0 %v828, 32
    %v855 = vpop.permute.xlu0 %854
    %858 = vrot.lane.b32.xlu0 %v846, 48
    %v859 = vpop.permute.xlu0 %858
    %862 = vrot.lane.b32.xlu0 %v837, 64
    %v863 = vpop.permute.xlu0 %862
    %866 = vrot.lane.b32.xlu0 %v847, 80
    %v867 = vpop.permute.xlu0 %866
    %870 = vrot.lane.b32.xlu0 %v844, 96
    %v871 = vpop.permute.xlu0 %870
    %874 = vrot.lane.b32.xlu0 %v848, 112
    %v875 = vpop.permute.xlu0 %874
    %v877 = vsel %vm769, %v821, %v851
    %v878 = vsel %vm771, %v877, %v855
    %v879 = vsel %vm773, %v878, %v859
    %v880 = vsel %vm775, %v879, %v863
    %v881 = vsel %vm777, %v880, %v867
    %v882 = vsel %vm779, %v881, %v871
    %v883 = vsel %vm781, %v882, %v875
    %v886 = vcombine.low %v782, %v883
    %v888 = vunpack.c.l.s4 1966171168
    %v889 = vunpack.c.0.s8 %v888
    %v890 = vlaneseq
    %v891 = vshrl.u32 %v890, 7
    %v892 = vsub.s32 %v889, %v891
    %v893 = vrot.slane %v886, %v892
    %v894 = vcombine.high %v893, %v893
    %v896 = vunpack.c.l.s4 1966171168
    %v897 = vunpack.c.0.s8 %v896
    %v898 = vlaneseq
    %v899 = vshrl.u32 %v898, 7
    %v900 = vsub.s32 %v897, %v899
    %v901 = vrot.slane %v893, %v900
    %v903 = vunpack.c.l.s4 1966171168
    %v904 = vunpack.c.0.s8 %v903
    %v905 = vlaneseq
    %v906 = vshrl.u32 %v905, 7
    %v907 = vsub.s32 %v904, %v906
    %v908 = vrot.slane %v894, %v907
    %v911 = vlaneseq
    %vm912 = vcmp.ge.s32.totalorder %v911, 0
    %vm913 = vcmp.lt.s32.totalorder %v911, 256
    %vm914 = vmand %vm912, %vm913
    %915 = vst.msk [vmem:[#allocation10] sm:$0x3] %vm914, %v901
    %916 = vst.msk [vmem:[#allocation10 + $0x2] sm:$0x3] %vm914, %v908
    // Predicated region
    $region50: #{tpu_custom_call.1} parent=1 // pred_check
      _
    $region51: #{tpu_custom_call.1} parent=1 // pred_check_branch
      %918 = sbr.rel (0) target = $region53
    $region52: #{tpu_custom_call.1} parent=1 // pred_region
      %s920 = ssub.s32 64, 64
      %921 = vsyncadd [#allocation4], %s920
      %s922 = sshll.u32 [#allocation10], 4
      %s923 = int_to_ptr.vmem [resolvable:$true] %s922
      %928 = dma.vmem_to_hbm [thread:$0]  %s923, 64, %s8, [#allocation4], 32, 32, 2
    $region53: #{tpu_custom_call.1} parent=1 // pred_fallthru
      _
    // Predicated region
    $region54: #{tpu_custom_call.1} parent=1 // pred_check
      _
    $region55: #{tpu_custom_call.1} parent=1 // pred_check_branch
      %930 = sbr.rel (0) target = $region57
    $region56: #{tpu_custom_call.1} parent=1 // pred_region
      %931 = dma.done [#allocation4], 64
    $region57: #{tpu_custom_call.1} parent=1 // pred_fallthru
      _
    %932 = vsyncpa [#allocation3], 1
    %933 = vsyncpa [#allocation6], 1
    %934 = vsyncpa [#allocation9], 1
    %935 = vsyncpa [#allocation4], 1

</llo_original>
